<compile_context>
chip_gen: v7x
topology: tpu7x:2x2x1
jax: 0.10.0
libtpu: 0.0.40
codegen_flags: <defaults>
</compile_context>

<pallas_src>
import functools
import math

import jax
import jax.numpy as jnp
from jax import lax
from jax.experimental import pallas as pl
from jax.experimental.pallas import tpu as pltpu


def _round_up(x, m):
    return (x + m - 1) // m * m


def _fit(dim, blk):
    # Small dims: one full lane-aligned block.  Large dims: pad to a multiple
    # of the block size and tile.
    if dim <= blk:
        p = _round_up(dim, 128)
        return p, p
    return _round_up(dim, blk), blk


# ---------------------------------------------------------------------------
# Fused kernel:  out = (adj @ x) @ W    (or (adj^T @ x) @ W)
#   grid = (row blocks of out, contraction blocks over graph nodes)
#   agg_ref : f32 VMEM scratch (tm, F_in_pad), lives across the k axis.
# ---------------------------------------------------------------------------
def _gcn_fused_kernel(adj_ref, x_ref, w_ref, o_ref, agg_ref, *, transpose_adj):
    k = pl.program_id(1)

    @pl.when(k == 0)
    def _():
        agg_ref[...] = jnp.zeros_like(agg_ref)

    a = adj_ref[...]
    x = x_ref[...]
    if transpose_adj:
        # agg += A^T @ X with the transpose folded into the MXU contraction.
        agg_ref[...] += lax.dot_general(
            a, x,
            dimension_numbers=(((0,), (0,)), ((), ())),
            preferred_element_type=jnp.float32)
    else:
        agg_ref[...] += jnp.dot(a, x, preferred_element_type=jnp.float32)

    @pl.when(k == pl.num_programs(1) - 1)
    def _():
        # Feature transform of the finished aggregation, straight from VMEM.
        o_ref[...] = jnp.dot(
            agg_ref[...].astype(w_ref.dtype), w_ref[...],
            preferred_element_type=jnp.float32).astype(o_ref.dtype)


def _gcn_fused(adj, x, w, *, transpose_adj=False, compute_dtype=None,
               block_m=256, block_k=256, out_dtype=jnp.float32,
               vmem_cap=32 * 1024 * 1024):
    """out = (adj @ x) @ w  (or (adj^T @ x) @ w) in a single pallas_call.

    Returns None when the fused tile budget would not fit in VMEM; the caller
    then falls back to the unfused tiled-matmul path.
    """
    if transpose_adj:
        kc_dim, m_dim = adj.shape
    else:
        m_dim, kc_dim = adj.shape
    kx, f_in = x.shape
    fw, f_out = w.shape
    assert kx == kc_dim and fw == f_in, (adj.shape, x.shape, w.shape)

    m_pad, tm = _fit(m_dim, block_m)
    k_pad, tk = _fit(kc_dim, block_k)
    fin_pad = _round_up(f_in, 128)
    fout_pad = _round_up(f_out, 128)

    in_dtype = compute_dtype if compute_dtype is not None else adj.dtype
    isz = jnp.dtype(in_dtype).itemsize
    osz = jnp.dtype(out_dtype).itemsize

    # Double-buffered adj / x / out tiles, resident weight, f32 agg scratch.
    vmem_need = (2 * tm * tk * isz
                 + 2 * tk * fin_pad * isz
                 + 2 * fin_pad * fout_pad * isz
                 + 2 * tm * fout_pad * osz
                 + tm * fin_pad * 4)
    if vmem_need > vmem_cap:
        return None

    if compute_dtype is not None:
        adj = adj.astype(compute_dtype)
        x = x.astype(compute_dtype)
        w = w.astype(compute_dtype)

    if transpose_adj:
        adj_p = jnp.pad(adj, ((0, k_pad - kc_dim), (0, m_pad - m_dim)))
        adj_spec = pl.BlockSpec((tk, tm), lambda i, k: (k, i))
    else:
        adj_p = jnp.pad(adj, ((0, m_pad - m_dim), (0, k_pad - kc_dim)))
        adj_spec = pl.BlockSpec((tm, tk), lambda i, k: (i, k))
    x_p = jnp.pad(x, ((0, k_pad - kc_dim), (0, fin_pad - f_in)))
    w_p = jnp.pad(w, ((0, fin_pad - f_in), (0, fout_pad - f_out)))

    grid = (m_pad // tm, k_pad // tk)

    cost = pl.CostEstimate(
        flops=2 * m_pad * k_pad * fin_pad + 2 * m_pad * fin_pad * fout_pad,
        transcendentals=0,
        bytes_accessed=(adj_p.size + x_p.size * grid[0] + w_p.size) * isz
        + m_pad * fout_pad * osz)

    vmem_limit = None
    if vmem_need > 16 * 1024 * 1024:
        vmem_limit = min(2 * vmem_need, 48 * 1024 * 1024)

    out = pl.pallas_call(
        functools.partial(_gcn_fused_kernel, transpose_adj=transpose_adj),
        out_shape=jax.ShapeDtypeStruct((m_pad, fout_pad), out_dtype),
        grid_spec=pltpu.PrefetchScalarGridSpec(
            num_scalar_prefetch=0,
            grid=grid,
            in_specs=[adj_spec,
                      pl.BlockSpec((tk, fin_pad), lambda i, k: (k, 0)),
                      pl.BlockSpec((fin_pad, fout_pad), lambda i, k: (0, 0))],
            out_specs=pl.BlockSpec((tm, fout_pad), lambda i, k: (i, 0)),
            scratch_shapes=[pltpu.VMEM((tm, fin_pad), jnp.float32)]),
        compiler_params=pltpu.CompilerParams(
            dimension_semantics=("parallel", "arbitrary"),
            vmem_limit_bytes=vmem_limit),
        cost_estimate=cost,
    )(adj_p, x_p, w_p)
    return out[:m_dim, :f_out]


# ---------------------------------------------------------------------------
# Unfused fallback: generic tiled matmul (grid over M, N, K blocks).
# ---------------------------------------------------------------------------
def _matmul_kernel(a_ref, b_ref, o_ref, acc_ref, *, transpose_lhs):
    @pl.when(pl.program_id(2) == 0)
    def _():
        acc_ref[...] = jnp.zeros_like(acc_ref)

    a = a_ref[...]
    b = b_ref[...]
    if transpose_lhs:
        acc_ref[...] += lax.dot_general(
            a, b,
            dimension_numbers=(((0,), (0,)), ((), ())),
            preferred_element_type=jnp.float32)
    else:
        acc_ref[...] += jnp.dot(a, b, preferred_element_type=jnp.float32)

    @pl.when(pl.program_id(2) == pl.num_programs(2) - 1)
    def _():
        o_ref[...] = acc_ref[...].astype(o_ref.dtype)


def _pallas_matmul(a, b, *, transpose_lhs=False, compute_dtype=None,
                   block_m=256, block_n=256, block_k=256,
                   out_dtype=jnp.float32):
    """C = A @ B (or A^T @ B if transpose_lhs) via a tiled Pallas TPU kernel."""
    if transpose_lhs:
        k_dim, m_dim = a.shape
    else:
        m_dim, k_dim = a.shape
    kb, n_dim = b.shape
    assert kb == k_dim, (a.shape, b.shape, transpose_lhs)

    if compute_dtype is not None:
        a = a.astype(compute_dtype)
        b = b.astype(compute_dtype)

    m_pad, tm = _fit(m_dim, block_m)
    n_pad, tn = _fit(n_dim, block_n)
    k_pad, tk = _fit(k_dim, block_k)

    if transpose_lhs:
        a_p = jnp.pad(a, ((0, k_pad - k_dim), (0, m_pad - m_dim)))
        a_spec = pl.BlockSpec((tk, tm), lambda i, j, k: (k, i))
    else:
        a_p = jnp.pad(a, ((0, m_pad - m_dim), (0, k_pad - k_dim)))
        a_spec = pl.BlockSpec((tm, tk), lambda i, j, k: (i, k))
    b_p = jnp.pad(b, ((0, k_pad - k_dim), (0, n_pad - n_dim)))
    b_spec = pl.BlockSpec((tk, tn), lambda i, j, k: (k, j))
    o_spec = pl.BlockSpec((tm, tn), lambda i, j, k: (i, j))

    grid = (m_pad // tm, n_pad // tn, k_pad // tk)

    in_itemsize = jnp.dtype(a_p.dtype).itemsize
    out_itemsize = jnp.dtype(out_dtype).itemsize
    cost = pl.CostEstimate(
        flops=2 * m_pad * n_pad * k_pad,
        transcendentals=0,
        bytes_accessed=(a_p.size + b_p.size) * in_itemsize
        + m_pad * n_pad * out_itemsize)

    vmem_need = (2 * (tm * tk + tk * tn) * in_itemsize
                 + 2 * tm * tn * out_itemsize + tm * tn * 4)
    vmem_limit = None
    if vmem_need > 16 * 1024 * 1024:
        vmem_limit = min(2 * vmem_need, 48 * 1024 * 1024)

    out = pl.pallas_call(
        functools.partial(_matmul_kernel, transpose_lhs=transpose_lhs),
        out_shape=jax.ShapeDtypeStruct((m_pad, n_pad), out_dtype),
        grid_spec=pltpu.PrefetchScalarGridSpec(
            num_scalar_prefetch=0,
            grid=grid,
            in_specs=[a_spec, b_spec],
            out_specs=o_spec,
            scratch_shapes=[pltpu.VMEM((tm, tn), jnp.float32)]),
        compiler_params=pltpu.CompilerParams(
            dimension_semantics=("parallel", "parallel", "arbitrary"),
            vmem_limit_bytes=vmem_limit),
        cost_estimate=cost,
    )(a_p, b_p)
    return out[:m_dim, :n_dim]


# ---------------------------------------------------------------------------
# GraphConvolution.forward
# ---------------------------------------------------------------------------
def graph_convolution(pre, cur, adj, weight, *, compute_dtype=None,
                      use_fused=None):
    """Pallas implementation of GraphConvolution.forward.

    pre:    (N_pre, F_in)
    cur:    (N_cur, F_in)
    adj:    (N_pre, N_cur)
    weight: (F_in, F_out)
    returns (pre_out: (N_pre, F_out), cur_out: (N_cur, F_out))
    """
    f_in, f_out = weight.shape

    if use_fused is None or use_fused:
        pre_out = _gcn_fused(adj, cur, weight, transpose_adj=False,
                             compute_dtype=compute_dtype)
        cur_out = _gcn_fused(adj, pre, weight, transpose_adj=True,
                             compute_dtype=compute_dtype)
        if pre_out is not None and cur_out is not None:
            return pre_out, cur_out
        if use_fused:
            raise ValueError("Fused GCN path does not fit the VMEM budget.")

    # Unfused fallback (very large feature dims): four tiled matmuls; pick
    # the association order so the adjacency aggregation contracts over the
    # smaller feature dim.
    mm = functools.partial(_pallas_matmul, compute_dtype=compute_dtype)
    if f_out <= f_in:
        pre_t = mm(pre, weight)                       # pre @ W
        cur_t = mm(cur, weight)                       # cur @ W
        pre_out = mm(adj, cur_t)                      # adj   @ (cur @ W)
        cur_out = mm(adj, pre_t, transpose_lhs=True)  # adj^T @ (pre @ W)
    else:
        agg_pre = mm(adj, cur)                        # adj   @ cur
        agg_cur = mm(adj, pre, transpose_lhs=True)    # adj^T @ pre
        pre_out = mm(agg_pre, weight)
        cur_out = mm(agg_cur, weight)
    return pre_out, cur_out


if __name__ == "__main__":
    # Small, deterministic example shapes consistent with the module.
    N_PRE, N_CUR = 16, 16     # number of graph nodes in each view
    F_IN, F_OUT = 32, 64      # in_features -> out_features

    key = jax.random.PRNGKey(0)
    k_pre, k_cur, k_adj, k_w = jax.random.split(key, 4)

    pre = jax.random.normal(k_pre, (N_PRE, F_IN), dtype=jnp.float32)
    cur = jax.random.normal(k_cur, (N_CUR, F_IN), dtype=jnp.float32)
    adj = jax.random.normal(k_adj, (N_PRE, N_CUR), dtype=jnp.float32)

    # reset_parameters(): uniform(-stdv, stdv) with stdv = 1/sqrt(out_features)
    stdv = 1.0 / math.sqrt(F_OUT)
    weight = jax.random.uniform(
        k_w, (F_IN, F_OUT), dtype=jnp.float32, minval=-stdv, maxval=stdv)

    # Reference (same semantics as PyTorch forward).
    pre_ref = adj @ (cur @ weight)
    cur_ref = adj.T @ (pre @ weight)

    # Default (fused) path.
    fwd = jax.jit(graph_convolution)
    pre_out, cur_out = fwd(pre, cur, adj, weight)
    jax.block_until_ready((pre_out, cur_out))
    assert pre_out.shape == (N_PRE, F_OUT) and cur_out.shape == (N_CUR, F_OUT)
    assert jnp.allclose(pre_out, pre_ref, atol=1e-3, rtol=1e-3)
    assert jnp.allclose(cur_out, cur_ref, atol=1e-3, rtol=1e-3)

    # Unfused fallback path (exercised explicitly so it stays correct).
    fwd_unfused = jax.jit(functools.partial(graph_convolution, use_fused=False))
    pre_uf, cur_uf = fwd_unfused(pre, cur, adj, weight)
    jax.block_until_ready((pre_uf, cur_uf))
    assert jnp.allclose(pre_uf, pre_ref, atol=1e-3, rtol=1e-3)
    assert jnp.allclose(cur_uf, cur_ref, atol=1e-3, rtol=1e-3)

    # bf16-operand path (f32 accumulation) for the v6e/v7x MXU; looser check.
    fwd_bf16 = jax.jit(
        functools.partial(graph_convolution, compute_dtype=jnp.bfloat16))
    pre_bf16, cur_bf16 = fwd_bf16(pre, cur, adj, weight)
    jax.block_until_ready((pre_bf16, cur_bf16))
    assert jnp.allclose(pre_bf16, pre_ref, atol=2e-1, rtol=1e-1)
    assert jnp.allclose(cur_bf16, cur_ref, atol=2e-1, rtol=1e-1)

    print("KERNEL_OK")
</pallas_src>

<mosaic_0001>
module attributes {stable_mosaic.version = 11 : i64} {
  func.func @_gcn_fused_kernel(%arg0: i32, %arg1: i32, %arg2: memref<128x128xf32, #tpu.memory_space<vmem>>, %arg3: memref<128x128xf32, #tpu.memory_space<vmem>>, %arg4: memref<128x128xf32, #tpu.memory_space<vmem>>, %arg5: memref<128x128xf32, #tpu.memory_space<vmem>>, %arg6: memref<128x128xf32, #tpu.memory_space<vmem>>) attributes {dimension_semantics = [#tpu.dimension_semantics<parallel>, #tpu.dimension_semantics<arbitrary>], iteration_bounds = array<i64: 1, 1>, scalar_prefetch = 0 : i64, scratch_operands = 1 : i64, tpu.core_type = #tpu.core_type<tc>, window_params = [{transform_indices = @transform_0, window_bounds = array<i64: 128, 128>}, {transform_indices = @transform_1, window_bounds = array<i64: 128, 128>}, {pipeline_mode = #tpu.pipeline_mode<synchronous>, transform_indices = @transform_2, window_bounds = array<i64: 128, 128>}, {transform_indices = @transform_3, window_bounds = array<i64: 128, 128>}]} {
    %c0_i32 = arith.constant 0 : i32
    %0 = arith.cmpi eq, %arg1, %c0_i32 : i32
    %1 = arith.extui %0 : i1 to i32
    %c0_i32_0 = arith.constant 0 : i32
    %2 = arith.cmpi ne, %1, %c0_i32_0 : i32
    scf.if %2 {
      %cst_10 = arith.constant 0.000000e+00 : f32
      %12 = vector.broadcast %cst_10 : f32 to vector<128x128xf32>
      %c0_11 = arith.constant 0 : index
      %c0_12 = arith.constant 0 : index
      %13 = vector.load %arg6[%c0_11, %c0_12] : memref<128x128xf32, #tpu.memory_space<vmem>>, vector<128x128xf32>
      tpu.vector_store %arg6[%c0_11, %c0_12], %12 {strides = array<i32>} : memref<128x128xf32, #tpu.memory_space<vmem>>, vector<128x128xf32>,
    } else {
    }
    %c0 = arith.constant 0 : index
    %c0_1 = arith.constant 0 : index
    %3 = vector.load %arg2[%c0, %c0_1] : memref<128x128xf32, #tpu.memory_space<vmem>>, vector<128x128xf32>
    %c0_2 = arith.constant 0 : index
    %c0_3 = arith.constant 0 : index
    %4 = vector.load %arg3[%c0_2, %c0_3] : memref<128x128xf32, #tpu.memory_space<vmem>>, vector<128x128xf32>
    %c0_4 = arith.constant 0 : index
    %c0_5 = arith.constant 0 : index
    %5 = vector.load %arg6[%c0_4, %c0_5] : memref<128x128xf32, #tpu.memory_space<vmem>>, vector<128x128xf32>
    %cst = arith.constant dense<0.000000e+00> : vector<128x128xf32>
    %6 = tpu.matmul %3, %4, %cst {dimension_numbers = #tpu.dot_dimension_numbers<[0], [0], [1], [1], [0, 1, 1, 1], [], []>} : vector<128x128xf32>, vector<128x128xf32>, vector<128x128xf32> -> vector<128x128xf32>
    %7 = arith.addf %5, %6 : vector<128x128xf32>
    %c0_6 = arith.constant 0 : index
    %c0_7 = arith.constant 0 : index
    %8 = vector.load %arg6[%c0_6, %c0_7] : memref<128x128xf32, #tpu.memory_space<vmem>>, vector<128x128xf32>
    tpu.vector_store %arg6[%c0_6, %c0_7], %7 {strides = array<i32>} : memref<128x128xf32, #tpu.memory_space<vmem>>, vector<128x128xf32>,
    %c0_i32_8 = arith.constant 0 : i32
    %9 = arith.cmpi eq, %arg1, %c0_i32_8 : i32
    %10 = arith.extui %9 : i1 to i32
    %c0_i32_9 = arith.constant 0 : i32
    %11 = arith.cmpi ne, %10, %c0_i32_9 : i32
    scf.if %11 {
      %c0_10 = arith.constant 0 : index
      %c0_11 = arith.constant 0 : index
      %12 = vector.load %arg6[%c0_10, %c0_11] : memref<128x128xf32, #tpu.memory_space<vmem>>, vector<128x128xf32>
      %c0_12 = arith.constant 0 : index
      %c0_13 = arith.constant 0 : index
      %13 = vector.load %arg4[%c0_12, %c0_13] : memref<128x128xf32, #tpu.memory_space<vmem>>, vector<128x128xf32>
      %cst_14 = arith.constant dense<0.000000e+00> : vector<128x128xf32>
      %14 = tpu.matmul %12, %13, %cst_14 {dimension_numbers = #tpu.dot_dimension_numbers<[1], [0], [0], [1], [0, 0, 1, 1], [], []>} : vector<128x128xf32>, vector<128x128xf32>, vector<128x128xf32> -> vector<128x128xf32>
      %c0_15 = arith.constant 0 : index
      %c0_16 = arith.constant 0 : index
      %15 = vector.load %arg5[%c0_15, %c0_16] : memref<128x128xf32, #tpu.memory_space<vmem>>, vector<128x128xf32>
      tpu.vector_store %arg5[%c0_15, %c0_16], %14 {strides = array<i32>} : memref<128x128xf32, #tpu.memory_space<vmem>>, vector<128x128xf32>,
    } else {
    }
    return
  }
  func.func @transform_0(%arg0: i32, %arg1: i32) -> (i32, i32) {
    %c0_i32 = arith.constant 0 : i32
    return %arg1, %arg0 : i32, i32
  }
  func.func @transform_1(%arg0: i32, %arg1: i32) -> (i32, i32) {
    %c0_i32 = arith.constant 0 : i32
    %c0_i32_0 = arith.constant 0 : i32
    return %arg1, %c0_i32 : i32, i32
  }
  func.func @transform_2(%arg0: i32, %arg1: i32) -> (i32, i32) {
    %c0_i32 = arith.constant 0 : i32
    %c0_i32_0 = arith.constant 0 : i32
    %c0_i32_1 = arith.constant 0 : i32
    return %c0_i32, %c0_i32_0 : i32, i32
  }
  func.func @transform_3(%arg0: i32, %arg1: i32) -> (i32, i32) {
    %c0_i32 = arith.constant 0 : i32
    %c0_i32_0 = arith.constant 0 : i32
    return %arg0, %c0_i32 : i32, i32
  }
}

module attributes {stable_mosaic.version = 11 : i64} {
  func.func @_gcn_fused_kernel(%arg0: i32, %arg1: i32, %arg2: memref<128x128xf32, #tpu.memory_space<vmem>>, %arg3: memref<128x128xf32, #tpu.memory_space<vmem>>, %arg4: memref<128x128xf32, #tpu.memory_space<vmem>>, %arg5: memref<128x128xf32, #tpu.memory_space<vmem>>, %arg6: memref<128x128xf32, #tpu.memory_space<vmem>>) attributes {dimension_semantics = [#tpu.dimension_semantics<parallel>, #tpu.dimension_semantics<arbitrary>], iteration_bounds = array<i64: 1, 1>, scalar_prefetch = 0 : i64, scratch_operands = 1 : i64, tpu.core_type = #tpu.core_type<tc>, window_params = [{transform_indices = @transform_0, window_bounds = array<i64: 128, 128>}, {transform_indices = @transform_1, window_bounds = array<i64: 128, 128>}, {pipeline_mode = #tpu.pipeline_mode<synchronous>, transform_indices = @transform_2, window_bounds = array<i64: 128, 128>}, {transform_indices = @transform_3, window_bounds = array<i64: 128, 128>}]} {
    %c0_i32 = arith.constant 0 : i32
    %0 = arith.cmpi eq, %arg1, %c0_i32 : i32
    %1 = arith.extui %0 : i1 to i32
    %c0_i32_0 = arith.constant 0 : i32
    %2 = arith.cmpi ne, %1, %c0_i32_0 : i32
    scf.if %2 {
      %cst_10 = arith.constant 0.000000e+00 : f32
      %12 = vector.broadcast %cst_10 : f32 to vector<128x128xf32>
      %c0_11 = arith.constant 0 : index
      %c0_12 = arith.constant 0 : index
      %13 = vector.load %arg6[%c0_11, %c0_12] : memref<128x128xf32, #tpu.memory_space<vmem>>, vector<128x128xf32>
      tpu.vector_store %arg6[%c0_11, %c0_12], %12 {strides = array<i32>} : memref<128x128xf32, #tpu.memory_space<vmem>>, vector<128x128xf32>,
    } else {
    }
    %c0 = arith.constant 0 : index
    %c0_1 = arith.constant 0 : index
    %3 = vector.load %arg2[%c0, %c0_1] : memref<128x128xf32, #tpu.memory_space<vmem>>, vector<128x128xf32>
    %c0_2 = arith.constant 0 : index
    %c0_3 = arith.constant 0 : index
    %4 = vector.load %arg3[%c0_2, %c0_3] : memref<128x128xf32, #tpu.memory_space<vmem>>, vector<128x128xf32>
    %c0_4 = arith.constant 0 : index
    %c0_5 = arith.constant 0 : index
    %5 = vector.load %arg6[%c0_4, %c0_5] : memref<128x128xf32, #tpu.memory_space<vmem>>, vector<128x128xf32>
    %cst = arith.constant dense<0.000000e+00> : vector<128x128xf32>
    %6 = tpu.matmul %3, %4, %cst {dimension_numbers = #tpu.dot_dimension_numbers<[1], [0], [0], [1], [0, 0, 1, 1], [], []>} : vector<128x128xf32>, vector<128x128xf32>, vector<128x128xf32> -> vector<128x128xf32>
    %7 = arith.addf %5, %6 : vector<128x128xf32>
    %c0_6 = arith.constant 0 : index
    %c0_7 = arith.constant 0 : index
    %8 = vector.load %arg6[%c0_6, %c0_7] : memref<128x128xf32, #tpu.memory_space<vmem>>, vector<128x128xf32>
    tpu.vector_store %arg6[%c0_6, %c0_7], %7 {strides = array<i32>} : memref<128x128xf32, #tpu.memory_space<vmem>>, vector<128x128xf32>,
    %c0_i32_8 = arith.constant 0 : i32
    %9 = arith.cmpi eq, %arg1, %c0_i32_8 : i32
    %10 = arith.extui %9 : i1 to i32
    %c0_i32_9 = arith.constant 0 : i32
    %11 = arith.cmpi ne, %10, %c0_i32_9 : i32
    scf.if %11 {
      %c0_10 = arith.constant 0 : index
      %c0_11 = arith.constant 0 : index
      %12 = vector.load %arg6[%c0_10, %c0_11] : memref<128x128xf32, #tpu.memory_space<vmem>>, vector<128x128xf32>
      %c0_12 = arith.constant 0 : index
      %c0_13 = arith.constant 0 : index
      %13 = vector.load %arg4[%c0_12, %c0_13] : memref<128x128xf32, #tpu.memory_space<vmem>>, vector<128x128xf32>
      %cst_14 = arith.constant dense<0.000000e+00> : vector<128x128xf32>
      %14 = tpu.matmul %12, %13, %cst_14 {dimension_numbers = #tpu.dot_dimension_numbers<[1], [0], [0], [1], [0, 0, 1, 1], [], []>} : vector<128x128xf32>, vector<128x128xf32>, vector<128x128xf32> -> vector<128x128xf32>
      %c0_15 = arith.constant 0 : index
      %c0_16 = arith.constant 0 : index
      %15 = vector.load %arg5[%c0_15, %c0_16] : memref<128x128xf32, #tpu.memory_space<vmem>>, vector<128x128xf32>
      tpu.vector_store %arg5[%c0_15, %c0_16], %14 {strides = array<i32>} : memref<128x128xf32, #tpu.memory_space<vmem>>, vector<128x128xf32>,
    } else {
    }
    return
  }
  func.func @transform_0(%arg0: i32, %arg1: i32) -> (i32, i32) {
    %c0_i32 = arith.constant 0 : i32
    return %arg0, %arg1 : i32, i32
  }
  func.func @transform_1(%arg0: i32, %arg1: i32) -> (i32, i32) {
    %c0_i32 = arith.constant 0 : i32
    %c0_i32_0 = arith.constant 0 : i32
    return %arg1, %c0_i32 : i32, i32
  }
  func.func @transform_2(%arg0: i32, %arg1: i32) -> (i32, i32) {
    %c0_i32 = arith.constant 0 : i32
    %c0_i32_0 = arith.constant 0 : i32
    %c0_i32_1 = arith.constant 0 : i32
    return %c0_i32, %c0_i32_0 : i32, i32
  }
  func.func @transform_3(%arg0: i32, %arg1: i32) -> (i32, i32) {
    %c0_i32 = arith.constant 0 : i32
    %c0_i32_0 = arith.constant 0 : i32
    return %arg0, %c0_i32 : i32, i32
  }
}

</mosaic_0001>

<llo_original>
// kernel: graph_convolution.3
$region0: #{graph_convolution.3}
  #allocation0 [shape = 'u32[]', space=smem, size = 0x4, offset = 0x4, fixed_abs, tag = 'smem constant byte address 0x4 - core index']
  #allocation1 [shape = 'u32[144,128]{1,0:T(1,128)}', space=vmem, size = 0x12000, scoped, tag = 'internal scratch']
  #allocation2 [shape = 'f32[128,128]{1,0:T(8,128)}', space=vmem, size = 0x10000, scoped, tag = 'scratch operand']
  %s0 = inlined_call_operand.vmem [shape: f32[128,128], index: 0, kind: input, shape index: {}]
  %s1 = inlined_call_operand.vmem [shape: f32[128,128], index: 1, kind: input, shape index: {}]
  %s2 = inlined_call_operand.vmem [shape: f32[128,128], index: 2, kind: input, shape index: {}]
  %s3 = inlined_call_operand.vmem [shape: f32[128,128], index: 3, kind: output, shape index: {}]
  %s4 = sld [smem:[#allocation0]]
  $region30: #{graph_convolution.3} parent=0
    _
  %s6 = ssub.s32 1, %s4
  %s7 = scalar_select 0, %s6, %s4
  // Predicated region
  $region2: #{graph_convolution.3} parent=0 // pred_check
    _
  $region3: #{graph_convolution.3} parent=0 // pred_check_branch
    %9 = sbr.rel (0) target = $region5
  $region4: #{graph_convolution.3} parent=0 // pred_region
    _
  $region5: #{graph_convolution.3} parent=0 // pred_fallthru
    _
  // Predicated region
  $region6: #{graph_convolution.3} parent=0 // pred_check
    _
  $region7: #{graph_convolution.3} parent=0 // pred_check_branch
    %11 = sbr.rel (0) target = $region9
  $region8: #{graph_convolution.3} parent=0 // pred_region
    _
  $region9: #{graph_convolution.3} parent=0 // pred_fallthru
    _
  // Predicated region
  $region10: #{graph_convolution.3} parent=0 // pred_check
    _
  $region11: #{graph_convolution.3} parent=0 // pred_check_branch
    %13 = sbr.rel (0) target = $region13
  $region12: #{graph_convolution.3} parent=0 // pred_region
    _
  $region13: #{graph_convolution.3} parent=0 // pred_fallthru
    _
  %p14 = scmp.eq.s32.totalorder 0, 0
  // Predicated region
  $region14: #{graph_convolution.3} parent=0 // pred_check
    %p15 = pneg %p14
  $region15: #{graph_convolution.3} parent=0 // pred_check_branch
    %17 = sbr.rel (%p15) target = $region17
  $region16: #{graph_convolution.3} parent=0 // pred_region
    %18 = vst [vmem:[#allocation2] sm:$0xff] 0.0
    %19 = vst [vmem:[#allocation2 + $0x8] sm:$0xff] 0.0
    %20 = vst [vmem:[#allocation2 + $0x10] sm:$0xff] 0.0
    %21 = vst [vmem:[#allocation2 + $0x18] sm:$0xff] 0.0
    %22 = vst [vmem:[#allocation2 + $0x20] sm:$0xff] 0.0
    %23 = vst [vmem:[#allocation2 + $0x28] sm:$0xff] 0.0
    %24 = vst [vmem:[#allocation2 + $0x30] sm:$0xff] 0.0
    %25 = vst [vmem:[#allocation2 + $0x38] sm:$0xff] 0.0
    %26 = vst [vmem:[#allocation2 + $0x40] sm:$0xff] 0.0
    %27 = vst [vmem:[#allocation2 + $0x48] sm:$0xff] 0.0
    %28 = vst [vmem:[#allocation2 + $0x50] sm:$0xff] 0.0
    %29 = vst [vmem:[#allocation2 + $0x58] sm:$0xff] 0.0
    %30 = vst [vmem:[#allocation2 + $0x60] sm:$0xff] 0.0
    %31 = vst [vmem:[#allocation2 + $0x68] sm:$0xff] 0.0
    %32 = vst [vmem:[#allocation2 + $0x70] sm:$0xff] 0.0
    %33 = vst [vmem:[#allocation2 + $0x78] sm:$0xff] 0.0
  $region17: #{graph_convolution.3} parent=0 // pred_fallthru
    _
  %v34 = vld [vmem:[%s0] sm:$0xff]
  %v35 = vld [vmem:[%s0 + $0x8] sm:$0xff]
  %v36 = vld [vmem:[%s0 + $0x10] sm:$0xff]
  %v37 = vld [vmem:[%s0 + $0x18] sm:$0xff]
  %v38 = vld [vmem:[%s0 + $0x20] sm:$0xff]
  %v39 = vld [vmem:[%s0 + $0x28] sm:$0xff]
  %v40 = vld [vmem:[%s0 + $0x30] sm:$0xff]
  %v41 = vld [vmem:[%s0 + $0x38] sm:$0xff]
  %v42 = vld [vmem:[%s0 + $0x40] sm:$0xff]
  %v43 = vld [vmem:[%s0 + $0x48] sm:$0xff]
  %v44 = vld [vmem:[%s0 + $0x50] sm:$0xff]
  %v45 = vld [vmem:[%s0 + $0x58] sm:$0xff]
  %v46 = vld [vmem:[%s0 + $0x60] sm:$0xff]
  %v47 = vld [vmem:[%s0 + $0x68] sm:$0xff]
  %v48 = vld [vmem:[%s0 + $0x70] sm:$0xff]
  %v49 = vld [vmem:[%s0 + $0x78] sm:$0xff]
  %v50 = vld [vmem:[%s1] sm:$0xff]
  %v51 = vld [vmem:[%s1 + $0x8] sm:$0xff]
  %v52 = vld [vmem:[%s1 + $0x10] sm:$0xff]
  %v53 = vld [vmem:[%s1 + $0x18] sm:$0xff]
  %v54 = vld [vmem:[%s1 + $0x20] sm:$0xff]
  %v55 = vld [vmem:[%s1 + $0x28] sm:$0xff]
  %v56 = vld [vmem:[%s1 + $0x30] sm:$0xff]
  %v57 = vld [vmem:[%s1 + $0x38] sm:$0xff]
  %v58 = vld [vmem:[%s1 + $0x40] sm:$0xff]
  %v59 = vld [vmem:[%s1 + $0x48] sm:$0xff]
  %v60 = vld [vmem:[%s1 + $0x50] sm:$0xff]
  %v61 = vld [vmem:[%s1 + $0x58] sm:$0xff]
  %v62 = vld [vmem:[%s1 + $0x60] sm:$0xff]
  %v63 = vld [vmem:[%s1 + $0x68] sm:$0xff]
  %v64 = vld [vmem:[%s1 + $0x70] sm:$0xff]
  %v65 = vld [vmem:[%s1 + $0x78] sm:$0xff]
  %v66 = vld [vmem:[#allocation2] sm:$0xff]
  %v67 = vld [vmem:[#allocation2 + $0x8] sm:$0xff]
  %v68 = vld [vmem:[#allocation2 + $0x10] sm:$0xff]
  %v69 = vld [vmem:[#allocation2 + $0x18] sm:$0xff]
  %v70 = vld [vmem:[#allocation2 + $0x20] sm:$0xff]
  %v71 = vld [vmem:[#allocation2 + $0x28] sm:$0xff]
  %v72 = vld [vmem:[#allocation2 + $0x30] sm:$0xff]
  %v73 = vld [vmem:[#allocation2 + $0x38] sm:$0xff]
  %v74 = vld [vmem:[#allocation2 + $0x40] sm:$0xff]
  %v75 = vld [vmem:[#allocation2 + $0x48] sm:$0xff]
  %v76 = vld [vmem:[#allocation2 + $0x50] sm:$0xff]
  %v77 = vld [vmem:[#allocation2 + $0x58] sm:$0xff]
  %v78 = vld [vmem:[#allocation2 + $0x60] sm:$0xff]
  %v79 = vld [vmem:[#allocation2 + $0x68] sm:$0xff]
  %v80 = vld [vmem:[#allocation2 + $0x70] sm:$0xff]
  %v81 = vld [vmem:[#allocation2 + $0x78] sm:$0xff]
  %82 = vxpose.xlu0.b32.start [1/16] %v34, 128
  %83 = vxpose.xlu0.b32.cont [2/16] %v35, 128
  %84 = vxpose.xlu0.b32.cont [3/16] %v36, 128
  %85 = vxpose.xlu0.b32.cont [4/16] %v37, 128
  %86 = vxpose.xlu0.b32.cont [5/16] %v38, 128
  %87 = vxpose.xlu0.b32.cont [6/16] %v39, 128
  %88 = vxpose.xlu0.b32.cont [7/16] %v40, 128
  %89 = vxpose.xlu0.b32.cont [8/16] %v41, 128
  %90 = vxpose.xlu0.b32.cont [9/16] %v42, 128
  %91 = vxpose.xlu0.b32.cont [10/16] %v43, 128
  %92 = vxpose.xlu0.b32.cont [11/16] %v44, 128
  %93 = vxpose.xlu0.b32.cont [12/16] %v45, 128
  %94 = vxpose.xlu0.b32.cont [13/16] %v46, 128
  %95 = vxpose.xlu0.b32.cont [14/16] %v47, 128
  %96 = vxpose.xlu0.b32.cont [15/16] %v48, 128
  %97 = vxpose.xlu0.b32.end [16/16] %v49, 128
  %v98 = vpop.trf.xlu0
  %v99 = vpop.trf.xlu0
  %v100 = vpop.trf.xlu0
  %v101 = vpop.trf.xlu0
  %v102 = vpop.trf.xlu0
  %v103 = vpop.trf.xlu0
  %v104 = vpop.trf.xlu0
  %v105 = vpop.trf.xlu0
  %v106 = vpop.trf.xlu0
  %v107 = vpop.trf.xlu0
  %v108 = vpop.trf.xlu0
  %v109 = vpop.trf.xlu0
  %v110 = vpop.trf.xlu0
  %v111 = vpop.trf.xlu0
  %v112 = vpop.trf.xlu0
  %v113 = vpop.trf.xlu0
  %114 = vmatprep.subr.mxu0 0.0
  %115 = vmatpush1.msra.mxu0 %v50
  %116 = vmatprep.subr.mxu0 0.0
  %117 = vmatpush1.msra.mxu0 %v51
  %118 = vmatprep.subr.mxu0 0.0
  %119 = vmatpush1.msra.mxu0 %v52
  %120 = vmatprep.subr.mxu0 0.0
  %121 = vmatpush1.msra.mxu0 %v53
  %122 = vmatprep.subr.mxu0 0.0
  %123 = vmatpush1.msra.mxu0 %v54
  %124 = vmatprep.subr.mxu0 0.0
  %125 = vmatpush1.msra.mxu0 %v55
  %126 = vmatprep.subr.mxu0 0.0
  %127 = vmatpush1.msra.mxu0 %v56
  %128 = vmatprep.subr.mxu0 0.0
  %129 = vmatpush1.msra.mxu0 %v57
  %130 = vmatprep.subr.mxu0 0.0
  %131 = vmatpush1.msra.mxu0 %v58
  %132 = vmatprep.subr.mxu0 0.0
  %133 = vmatpush1.msra.mxu0 %v59
  %134 = vmatprep.subr.mxu0 0.0
  %135 = vmatpush1.msra.mxu0 %v60
  %136 = vmatprep.subr.mxu0 0.0
  %137 = vmatpush1.msra.mxu0 %v61
  %138 = vmatprep.subr.mxu0 0.0
  %139 = vmatpush1.msra.mxu0 %v62
  %140 = vmatprep.subr.mxu0 0.0
  %141 = vmatpush1.msra.mxu0 %v63
  %142 = vmatprep.subr.mxu0 0.0
  %143 = vmatpush1.msra.mxu0 %v64
  %144 = vmatprep.subr.mxu0 0.0
  %145 = vmatpush1.msra.mxu0 %v65
  %146 = vmatprep.subr.mxu0 0.0
  %147 = vmatpush1.msra.mxu0 0.0
  %148 = vmatprep.subr.mxu0 0.0
  %149 = vmatpush1.msra.mxu0 0.0
  %150 = vmatprep.subr.mxu0 0.0
  %151 = vmatpush1.msra.mxu0 0.0
  %152 = vmatprep.subr.mxu0 0.0
  %153 = vmatpush1.msra.mxu0 0.0
  %154 = vmatprep.subr.mxu0 0.0
  %155 = vmatpush1.msra.mxu0 0.0
  %156 = vmatprep.subr.mxu0 0.0
  %157 = vmatpush1.msra.mxu0 0.0
  %158 = vmatprep.subr.mxu0 0.0
  %159 = vmatpush1.msra.mxu0 0.0
  %160 = vmatprep.subr.mxu0 0.0
  %161 = vmatpush1.msra.mxu0 0.0
  %162 = vmatprep.subr.mxu0 0.0
  %163 = vmatpush1.msra.mxu0 0.0
  %164 = vmatprep.subr.mxu0 0.0
  %165 = vmatpush1.msra.mxu0 0.0
  %166 = vmatprep.subr.mxu0 0.0
  %167 = vmatpush1.msra.mxu0 0.0
  %168 = vmatprep.subr.mxu0 0.0
  %169 = vmatpush1.msra.mxu0 0.0
  %170 = vmatprep.subr.mxu0 0.0
  %171 = vmatpush1.msra.mxu0 0.0
  %172 = vmatprep.subr.mxu0 0.0
  %173 = vmatpush1.msra.mxu0 0.0
  %174 = vmatprep.subr.mxu0 0.0
  %175 = vmatpush1.msra.mxu0 0.0
  %176 = vmatprep.subr.mxu0 0.0
  %177 = vmatpush1.msra.mxu0 0.0
  %178 = vmatprep.mubr.f32.mxu0 0.0
  %179 = vmatmul.mubr.f32.gmra.mrb[0].mxu0 %v98
  %v180 = vpop.f32.mrb[0].mxu0
  %v181 = vadd.f32 0.0, %v180
  %v182 = vpop.f32.mrb[0].mxu0
  %183 = vmatprep.mubr.f32.mxu0 0.0
  %184 = vmatmul.mubr.f32.gmra.mrb[0].mxu0 %v99
  %v185 = vpop.f32.mrb[0].mxu0
  %v186 = vadd.f32 0.0, %v185
  %v187 = vpop.f32.mrb[0].mxu0
  %188 = vmatprep.mubr.f32.mxu0 0.0
  %189 = vmatmul.mubr.f32.gmra.mrb[0].mxu0 %v100
  %v190 = vpop.f32.mrb[0].mxu0
  %v191 = vadd.f32 0.0, %v190
  %v192 = vpop.f32.mrb[0].mxu0
  %193 = vmatprep.mubr.f32.mxu0 0.0
  %194 = vmatmul.mubr.f32.gmra.mrb[0].mxu0 %v101
  %v195 = vpop.f32.mrb[0].mxu0
  %v196 = vadd.f32 0.0, %v195
  %v197 = vpop.f32.mrb[0].mxu0
  %198 = vmatprep.mubr.f32.mxu0 0.0
  %199 = vmatmul.mubr.f32.gmra.mrb[0].mxu0 %v102
  %v200 = vpop.f32.mrb[0].mxu0
  %v201 = vadd.f32 0.0, %v200
  %v202 = vpop.f32.mrb[0].mxu0
  %203 = vmatprep.mubr.f32.mxu0 0.0
  %204 = vmatmul.mubr.f32.gmra.mrb[0].mxu0 %v103
  %v205 = vpop.f32.mrb[0].mxu0
  %v206 = vadd.f32 0.0, %v205
  %v207 = vpop.f32.mrb[0].mxu0
  %208 = vmatprep.mubr.f32.mxu0 0.0
  %209 = vmatmul.mubr.f32.gmra.mrb[0].mxu0 %v104
  %v210 = vpop.f32.mrb[0].mxu0
  %v211 = vadd.f32 0.0, %v210
  %v212 = vpop.f32.mrb[0].mxu0
  %213 = vmatprep.mubr.f32.mxu0 0.0
  %214 = vmatmul.mubr.f32.gmra.mrb[0].mxu0 %v105
  %v215 = vpop.f32.mrb[0].mxu0
  %v216 = vadd.f32 0.0, %v215
  %v217 = vpop.f32.mrb[0].mxu0
  %218 = vmatprep.mubr.f32.mxu0 0.0
  %219 = vmatmul.mubr.f32.gmra.mrb[0].mxu0 %v106
  %v220 = vpop.f32.mrb[0].mxu0
  %v221 = vadd.f32 0.0, %v220
  %v222 = vpop.f32.mrb[0].mxu0
  %223 = vmatprep.mubr.f32.mxu0 0.0
  %224 = vmatmul.mubr.f32.gmra.mrb[0].mxu0 %v107
  %v225 = vpop.f32.mrb[0].mxu0
  %v226 = vadd.f32 0.0, %v225
  %v227 = vpop.f32.mrb[0].mxu0
  %228 = vmatprep.mubr.f32.mxu0 0.0
  %229 = vmatmul.mubr.f32.gmra.mrb[0].mxu0 %v108
  %v230 = vpop.f32.mrb[0].mxu0
  %v231 = vadd.f32 0.0, %v230
  %v232 = vpop.f32.mrb[0].mxu0
  %233 = vmatprep.mubr.f32.mxu0 0.0
  %234 = vmatmul.mubr.f32.gmra.mrb[0].mxu0 %v109
  %v235 = vpop.f32.mrb[0].mxu0
  %v236 = vadd.f32 0.0, %v235
  %v237 = vpop.f32.mrb[0].mxu0
  %238 = vmatprep.mubr.f32.mxu0 0.0
  %239 = vmatmul.mubr.f32.gmra.mrb[0].mxu0 %v110
  %v240 = vpop.f32.mrb[0].mxu0
  %v241 = vadd.f32 0.0, %v240
  %v242 = vpop.f32.mrb[0].mxu0
  %243 = vmatprep.mubr.f32.mxu0 0.0
  %244 = vmatmul.mubr.f32.gmra.mrb[0].mxu0 %v111
  %v245 = vpop.f32.mrb[0].mxu0
  %v246 = vadd.f32 0.0, %v245
  %v247 = vpop.f32.mrb[0].mxu0
  %248 = vmatprep.mubr.f32.mxu0 0.0
  %249 = vmatmul.mubr.f32.gmra.mrb[0].mxu0 %v112
  %v250 = vpop.f32.mrb[0].mxu0
  %v251 = vadd.f32 0.0, %v250
  %v252 = vpop.f32.mrb[0].mxu0
  %253 = vmatprep.mubr.f32.mxu0 0.0
  %254 = vmatmul.mubr.f32.gmra.mrb[0].mxu0 %v113
  %v255 = vpop.f32.mrb[0].mxu0
  %v256 = vadd.f32 0.0, %v255
  %v257 = vpop.f32.mrb[0].mxu0
  %258 = vdwg.mxu0
  %v259 = vadd.f32 %v66, %v181
  %v260 = vadd.f32 %v67, %v186
  %v261 = vadd.f32 %v68, %v191
  %v262 = vadd.f32 %v69, %v196
  %v263 = vadd.f32 %v70, %v201
  %v264 = vadd.f32 %v71, %v206
  %v265 = vadd.f32 %v72, %v211
  %v266 = vadd.f32 %v73, %v216
  %v267 = vadd.f32 %v74, %v221
  %v268 = vadd.f32 %v75, %v226
  %v269 = vadd.f32 %v76, %v231
  %v270 = vadd.f32 %v77, %v236
  %v271 = vadd.f32 %v78, %v241
  %v272 = vadd.f32 %v79, %v246
  %v273 = vadd.f32 %v80, %v251
  %v274 = vadd.f32 %v81, %v256
  %275 = vst [vmem:[#allocation2] sm:$0xff] %v259
  %276 = vst [vmem:[#allocation2 + $0x8] sm:$0xff] %v260
  %277 = vst [vmem:[#allocation2 + $0x10] sm:$0xff] %v261
  %278 = vst [vmem:[#allocation2 + $0x18] sm:$0xff] %v262
  %279 = vst [vmem:[#allocation2 + $0x20] sm:$0xff] %v263
  %280 = vst [vmem:[#allocation2 + $0x28] sm:$0xff] %v264
  %281 = vst [vmem:[#allocation2 + $0x30] sm:$0xff] %v265
  %282 = vst [vmem:[#allocation2 + $0x38] sm:$0xff] %v266
  %283 = vst [vmem:[#allocation2 + $0x40] sm:$0xff] %v267
  %284 = vst [vmem:[#allocation2 + $0x48] sm:$0xff] %v268
  %285 = vst [vmem:[#allocation2 + $0x50] sm:$0xff] %v269
  %286 = vst [vmem:[#allocation2 + $0x58] sm:$0xff] %v270
  %287 = vst [vmem:[#allocation2 + $0x60] sm:$0xff] %v271
  %288 = vst [vmem:[#allocation2 + $0x68] sm:$0xff] %v272
  %289 = vst [vmem:[#allocation2 + $0x70] sm:$0xff] %v273
  %290 = vst [vmem:[#allocation2 + $0x78] sm:$0xff] %v274
  // Predicated region
  $region18: #{graph_convolution.3} parent=0 // pred_check
    %p291 = pneg %p14
  $region19: #{graph_convolution.3} parent=0 // pred_check_branch
    %293 = sbr.rel (%p291) target = $region21
  $region20: #{graph_convolution.3} parent=0 // pred_region
    %v294 = vld [vmem:[#allocation2] sm:$0xff]
    %v295 = vld [vmem:[#allocation2 + $0x8] sm:$0xff]
    %v296 = vld [vmem:[#allocation2 + $0x10] sm:$0xff]
    %v297 = vld [vmem:[#allocation2 + $0x18] sm:$0xff]
    %v298 = vld [vmem:[#allocation2 + $0x20] sm:$0xff]
    %v299 = vld [vmem:[#allocation2 + $0x28] sm:$0xff]
    %v300 = vld [vmem:[#allocation2 + $0x30] sm:$0xff]
    %v301 = vld [vmem:[#allocation2 + $0x38] sm:$0xff]
    %v302 = vld [vmem:[#allocation2 + $0x40] sm:$0xff]
    %v303 = vld [vmem:[#allocation2 + $0x48] sm:$0xff]
    %v304 = vld [vmem:[#allocation2 + $0x50] sm:$0xff]
    %v305 = vld [vmem:[#allocation2 + $0x58] sm:$0xff]
    %v306 = vld [vmem:[#allocation2 + $0x60] sm:$0xff]
    %v307 = vld [vmem:[#allocation2 + $0x68] sm:$0xff]
    %v308 = vld [vmem:[#allocation2 + $0x70] sm:$0xff]
    %v309 = vld [vmem:[#allocation2 + $0x78] sm:$0xff]
    %v310 = vld [vmem:[%s2] sm:$0xff]
    %v311 = vld [vmem:[%s2 + $0x8] sm:$0xff]
    %v312 = vld [vmem:[%s2 + $0x10] sm:$0xff]
    %v313 = vld [vmem:[%s2 + $0x18] sm:$0xff]
    %v314 = vld [vmem:[%s2 + $0x20] sm:$0xff]
    %v315 = vld [vmem:[%s2 + $0x28] sm:$0xff]
    %v316 = vld [vmem:[%s2 + $0x30] sm:$0xff]
    %v317 = vld [vmem:[%s2 + $0x38] sm:$0xff]
    %v318 = vld [vmem:[%s2 + $0x40] sm:$0xff]
    %v319 = vld [vmem:[%s2 + $0x48] sm:$0xff]
    %v320 = vld [vmem:[%s2 + $0x50] sm:$0xff]
    %v321 = vld [vmem:[%s2 + $0x58] sm:$0xff]
    %v322 = vld [vmem:[%s2 + $0x60] sm:$0xff]
    %v323 = vld [vmem:[%s2 + $0x68] sm:$0xff]
    %v324 = vld [vmem:[%s2 + $0x70] sm:$0xff]
    %v325 = vld [vmem:[%s2 + $0x78] sm:$0xff]
    %326 = vmatprep.subr.mxu0 0.0
    %327 = vmatpush1.msra.mxu0 %v310
    %328 = vmatprep.subr.mxu0 0.0
    %329 = vmatpush1.msra.mxu0 %v311
    %330 = vmatprep.subr.mxu0 0.0
    %331 = vmatpush1.msra.mxu0 %v312
    %332 = vmatprep.subr.mxu0 0.0
    %333 = vmatpush1.msra.mxu0 %v313
    %334 = vmatprep.subr.mxu0 0.0
    %335 = vmatpush1.msra.mxu0 %v314
    %336 = vmatprep.subr.mxu0 0.0
    %337 = vmatpush1.msra.mxu0 %v315
    %338 = vmatprep.subr.mxu0 0.0
    %339 = vmatpush1.msra.mxu0 %v316
    %340 = vmatprep.subr.mxu0 0.0
    %341 = vmatpush1.msra.mxu0 %v317
    %342 = vmatprep.subr.mxu0 0.0
    %343 = vmatpush1.msra.mxu0 %v318
    %344 = vmatprep.subr.mxu0 0.0
    %345 = vmatpush1.msra.mxu0 %v319
    %346 = vmatprep.subr.mxu0 0.0
    %347 = vmatpush1.msra.mxu0 %v320
    %348 = vmatprep.subr.mxu0 0.0
    %349 = vmatpush1.msra.mxu0 %v321
    %350 = vmatprep.subr.mxu0 0.0
    %351 = vmatpush1.msra.mxu0 %v322
    %352 = vmatprep.subr.mxu0 0.0
    %353 = vmatpush1.msra.mxu0 %v323
    %354 = vmatprep.subr.mxu0 0.0
    %355 = vmatpush1.msra.mxu0 %v324
    %356 = vmatprep.subr.mxu0 0.0
    %357 = vmatpush1.msra.mxu0 %v325
    %358 = vmatprep.subr.mxu0 0.0
    %359 = vmatpush1.msra.mxu0 0.0
    %360 = vmatprep.subr.mxu0 0.0
    %361 = vmatpush1.msra.mxu0 0.0
    %362 = vmatprep.subr.mxu0 0.0
    %363 = vmatpush1.msra.mxu0 0.0
    %364 = vmatprep.subr.mxu0 0.0
    %365 = vmatpush1.msra.mxu0 0.0
    %366 = vmatprep.subr.mxu0 0.0
    %367 = vmatpush1.msra.mxu0 0.0
    %368 = vmatprep.subr.mxu0 0.0
    %369 = vmatpush1.msra.mxu0 0.0
    %370 = vmatprep.subr.mxu0 0.0
    %371 = vmatpush1.msra.mxu0 0.0
    %372 = vmatprep.subr.mxu0 0.0
    %373 = vmatpush1.msra.mxu0 0.0
    %374 = vmatprep.subr.mxu0 0.0
    %375 = vmatpush1.msra.mxu0 0.0
    %376 = vmatprep.subr.mxu0 0.0
    %377 = vmatpush1.msra.mxu0 0.0
    %378 = vmatprep.subr.mxu0 0.0
    %379 = vmatpush1.msra.mxu0 0.0
    %380 = vmatprep.subr.mxu0 0.0
    %381 = vmatpush1.msra.mxu0 0.0
    %382 = vmatprep.subr.mxu0 0.0
    %383 = vmatpush1.msra.mxu0 0.0
    %384 = vmatprep.subr.mxu0 0.0
    %385 = vmatpush1.msra.mxu0 0.0
    %386 = vmatprep.subr.mxu0 0.0
    %387 = vmatpush1.msra.mxu0 0.0
    %388 = vmatprep.subr.mxu0 0.0
    %389 = vmatpush1.msra.mxu0 0.0
    %390 = vmatprep.mubr.f32.mxu0 0.0
    %391 = vmatmul.mubr.f32.gmra.mrb[0].mxu0 %v294
    %v392 = vpop.f32.mrb[0].mxu0
    %v393 = vadd.f32 0.0, %v392
    %v394 = vpop.f32.mrb[0].mxu0
    %395 = vmatprep.mubr.f32.mxu0 0.0
    %396 = vmatmul.mubr.f32.gmra.mrb[0].mxu0 %v295
    %v397 = vpop.f32.mrb[0].mxu0
    %v398 = vadd.f32 0.0, %v397
    %v399 = vpop.f32.mrb[0].mxu0
    %400 = vmatprep.mubr.f32.mxu0 0.0
    %401 = vmatmul.mubr.f32.gmra.mrb[0].mxu0 %v296
    %v402 = vpop.f32.mrb[0].mxu0
    %v403 = vadd.f32 0.0, %v402
    %v404 = vpop.f32.mrb[0].mxu0
    %405 = vmatprep.mubr.f32.mxu0 0.0
    %406 = vmatmul.mubr.f32.gmra.mrb[0].mxu0 %v297
    %v407 = vpop.f32.mrb[0].mxu0
    %v408 = vadd.f32 0.0, %v407
    %v409 = vpop.f32.mrb[0].mxu0
    %410 = vmatprep.mubr.f32.mxu0 0.0
    %411 = vmatmul.mubr.f32.gmra.mrb[0].mxu0 %v298
    %v412 = vpop.f32.mrb[0].mxu0
    %v413 = vadd.f32 0.0, %v412
    %v414 = vpop.f32.mrb[0].mxu0
    %415 = vmatprep.mubr.f32.mxu0 0.0
    %416 = vmatmul.mubr.f32.gmra.mrb[0].mxu0 %v299
    %v417 = vpop.f32.mrb[0].mxu0
    %v418 = vadd.f32 0.0, %v417
    %v419 = vpop.f32.mrb[0].mxu0
    %420 = vmatprep.mubr.f32.mxu0 0.0
    %421 = vmatmul.mubr.f32.gmra.mrb[0].mxu0 %v300
    %v422 = vpop.f32.mrb[0].mxu0
    %v423 = vadd.f32 0.0, %v422
    %v424 = vpop.f32.mrb[0].mxu0
    %425 = vmatprep.mubr.f32.mxu0 0.0
    %426 = vmatmul.mubr.f32.gmra.mrb[0].mxu0 %v301
    %v427 = vpop.f32.mrb[0].mxu0
    %v428 = vadd.f32 0.0, %v427
    %v429 = vpop.f32.mrb[0].mxu0
    %430 = vmatprep.mubr.f32.mxu0 0.0
    %431 = vmatmul.mubr.f32.gmra.mrb[0].mxu0 %v302
    %v432 = vpop.f32.mrb[0].mxu0
    %v433 = vadd.f32 0.0, %v432
    %v434 = vpop.f32.mrb[0].mxu0
    %435 = vmatprep.mubr.f32.mxu0 0.0
    %436 = vmatmul.mubr.f32.gmra.mrb[0].mxu0 %v303
    %v437 = vpop.f32.mrb[0].mxu0
    %v438 = vadd.f32 0.0, %v437
    %v439 = vpop.f32.mrb[0].mxu0
    %440 = vmatprep.mubr.f32.mxu0 0.0
    %441 = vmatmul.mubr.f32.gmra.mrb[0].mxu0 %v304
    %v442 = vpop.f32.mrb[0].mxu0
    %v443 = vadd.f32 0.0, %v442
    %v444 = vpop.f32.mrb[0].mxu0
    %445 = vmatprep.mubr.f32.mxu0 0.0
    %446 = vmatmul.mubr.f32.gmra.mrb[0].mxu0 %v305
    %v447 = vpop.f32.mrb[0].mxu0
    %v448 = vadd.f32 0.0, %v447
    %v449 = vpop.f32.mrb[0].mxu0
    %450 = vmatprep.mubr.f32.mxu0 0.0
    %451 = vmatmul.mubr.f32.gmra.mrb[0].mxu0 %v306
    %v452 = vpop.f32.mrb[0].mxu0
    %v453 = vadd.f32 0.0, %v452
    %v454 = vpop.f32.mrb[0].mxu0
    %455 = vmatprep.mubr.f32.mxu0 0.0
    %456 = vmatmul.mubr.f32.gmra.mrb[0].mxu0 %v307
    %v457 = vpop.f32.mrb[0].mxu0
    %v458 = vadd.f32 0.0, %v457
    %v459 = vpop.f32.mrb[0].mxu0
    %460 = vmatprep.mubr.f32.mxu0 0.0
    %461 = vmatmul.mubr.f32.gmra.mrb[0].mxu0 %v308
    %v462 = vpop.f32.mrb[0].mxu0
    %v463 = vadd.f32 0.0, %v462
    %v464 = vpop.f32.mrb[0].mxu0
    %465 = vmatprep.mubr.f32.mxu0 0.0
    %466 = vmatmul.mubr.f32.gmra.mrb[0].mxu0 %v309
    %v467 = vpop.f32.mrb[0].mxu0
    %v468 = vadd.f32 0.0, %v467
    %v469 = vpop.f32.mrb[0].mxu0
    %470 = vdwg.mxu0
    %471 = vst [vmem:[%s3] sm:$0xff] %v393
    %472 = vst [vmem:[%s3 + $0x8] sm:$0xff] %v398
    %473 = vst [vmem:[%s3 + $0x10] sm:$0xff] %v403
    %474 = vst [vmem:[%s3 + $0x18] sm:$0xff] %v408
    %475 = vst [vmem:[%s3 + $0x20] sm:$0xff] %v413
    %476 = vst [vmem:[%s3 + $0x28] sm:$0xff] %v418
    %477 = vst [vmem:[%s3 + $0x30] sm:$0xff] %v423
    %478 = vst [vmem:[%s3 + $0x38] sm:$0xff] %v428
    %479 = vst [vmem:[%s3 + $0x40] sm:$0xff] %v433
    %480 = vst [vmem:[%s3 + $0x48] sm:$0xff] %v438
    %481 = vst [vmem:[%s3 + $0x50] sm:$0xff] %v443
    %482 = vst [vmem:[%s3 + $0x58] sm:$0xff] %v448
    %483 = vst [vmem:[%s3 + $0x60] sm:$0xff] %v453
    %484 = vst [vmem:[%s3 + $0x68] sm:$0xff] %v458
    %485 = vst [vmem:[%s3 + $0x70] sm:$0xff] %v463
    %486 = vst [vmem:[%s3 + $0x78] sm:$0xff] %v468
  $region21: #{graph_convolution.3} parent=0 // pred_fallthru
    _
  // Predicated region
  $region22: #{graph_convolution.3} parent=0 // pred_check
    _
  $region23: #{graph_convolution.3} parent=0 // pred_check_branch
    %488 = sbr.rel (0) target = $region25
  $region24: #{graph_convolution.3} parent=0 // pred_region
    _
  $region25: #{graph_convolution.3} parent=0 // pred_fallthru
    _
  // Predicated region
  $region26: #{graph_convolution.3} parent=0 // pred_check
    _
  $region27: #{graph_convolution.3} parent=0 // pred_check_branch
    %490 = sbr.rel (0) target = $region29
  $region28: #{graph_convolution.3} parent=0 // pred_region
    _
  $region29: #{graph_convolution.3} parent=0 // pred_fallthru
    _

// kernel: graph_convolution.2
$region0: #{graph_convolution.2}
  #allocation0 [shape = 'u32[]', space=smem, size = 0x4, offset = 0x4, fixed_abs, tag = 'smem constant byte address 0x4 - core index']
  #allocation1 [shape = 'u32[144,128]{1,0:T(1,128)}', space=vmem, size = 0x12000, scoped, tag = 'internal scratch']
  #allocation2 [shape = 'f32[128,128]{1,0:T(8,128)}', space=vmem, size = 0x10000, scoped, tag = 'scratch operand']
  %s0 = inlined_call_operand.vmem [shape: f32[128,128], index: 0, kind: input, shape index: {}]
  %s1 = inlined_call_operand.vmem [shape: f32[128,128], index: 1, kind: input, shape index: {}]
  %s2 = inlined_call_operand.vmem [shape: f32[128,128], index: 2, kind: input, shape index: {}]
  %s3 = inlined_call_operand.vmem [shape: f32[128,128], index: 3, kind: output, shape index: {}]
  %s4 = sld [smem:[#allocation0]]
  $region30: #{graph_convolution.2} parent=0
    _
  %s6 = ssub.s32 1, %s4
  %s7 = scalar_select 0, %s6, %s4
  // Predicated region
  $region2: #{graph_convolution.2} parent=0 // pred_check
    _
  $region3: #{graph_convolution.2} parent=0 // pred_check_branch
    %9 = sbr.rel (0) target = $region5
  $region4: #{graph_convolution.2} parent=0 // pred_region
    _
  $region5: #{graph_convolution.2} parent=0 // pred_fallthru
    _
  // Predicated region
  $region6: #{graph_convolution.2} parent=0 // pred_check
    _
  $region7: #{graph_convolution.2} parent=0 // pred_check_branch
    %11 = sbr.rel (0) target = $region9
  $region8: #{graph_convolution.2} parent=0 // pred_region
    _
  $region9: #{graph_convolution.2} parent=0 // pred_fallthru
    _
  // Predicated region
  $region10: #{graph_convolution.2} parent=0 // pred_check
    _
  $region11: #{graph_convolution.2} parent=0 // pred_check_branch
    %13 = sbr.rel (0) target = $region13
  $region12: #{graph_convolution.2} parent=0 // pred_region
    _
  $region13: #{graph_convolution.2} parent=0 // pred_fallthru
    _
  %p14 = scmp.eq.s32.totalorder 0, 0
  // Predicated region
  $region14: #{graph_convolution.2} parent=0 // pred_check
    %p15 = pneg %p14
  $region15: #{graph_convolution.2} parent=0 // pred_check_branch
    %17 = sbr.rel (%p15) target = $region17
  $region16: #{graph_convolution.2} parent=0 // pred_region
    %18 = vst [vmem:[#allocation2] sm:$0xff] 0.0
    %19 = vst [vmem:[#allocation2 + $0x8] sm:$0xff] 0.0
    %20 = vst [vmem:[#allocation2 + $0x10] sm:$0xff] 0.0
    %21 = vst [vmem:[#allocation2 + $0x18] sm:$0xff] 0.0
    %22 = vst [vmem:[#allocation2 + $0x20] sm:$0xff] 0.0
    %23 = vst [vmem:[#allocation2 + $0x28] sm:$0xff] 0.0
    %24 = vst [vmem:[#allocation2 + $0x30] sm:$0xff] 0.0
    %25 = vst [vmem:[#allocation2 + $0x38] sm:$0xff] 0.0
    %26 = vst [vmem:[#allocation2 + $0x40] sm:$0xff] 0.0
    %27 = vst [vmem:[#allocation2 + $0x48] sm:$0xff] 0.0
    %28 = vst [vmem:[#allocation2 + $0x50] sm:$0xff] 0.0
    %29 = vst [vmem:[#allocation2 + $0x58] sm:$0xff] 0.0
    %30 = vst [vmem:[#allocation2 + $0x60] sm:$0xff] 0.0
    %31 = vst [vmem:[#allocation2 + $0x68] sm:$0xff] 0.0
    %32 = vst [vmem:[#allocation2 + $0x70] sm:$0xff] 0.0
    %33 = vst [vmem:[#allocation2 + $0x78] sm:$0xff] 0.0
  $region17: #{graph_convolution.2} parent=0 // pred_fallthru
    _
  %v34 = vld [vmem:[%s0] sm:$0xff]
  %v35 = vld [vmem:[%s0 + $0x8] sm:$0xff]
  %v36 = vld [vmem:[%s0 + $0x10] sm:$0xff]
  %v37 = vld [vmem:[%s0 + $0x18] sm:$0xff]
  %v38 = vld [vmem:[%s0 + $0x20] sm:$0xff]
  %v39 = vld [vmem:[%s0 + $0x28] sm:$0xff]
  %v40 = vld [vmem:[%s0 + $0x30] sm:$0xff]
  %v41 = vld [vmem:[%s0 + $0x38] sm:$0xff]
  %v42 = vld [vmem:[%s0 + $0x40] sm:$0xff]
  %v43 = vld [vmem:[%s0 + $0x48] sm:$0xff]
  %v44 = vld [vmem:[%s0 + $0x50] sm:$0xff]
  %v45 = vld [vmem:[%s0 + $0x58] sm:$0xff]
  %v46 = vld [vmem:[%s0 + $0x60] sm:$0xff]
  %v47 = vld [vmem:[%s0 + $0x68] sm:$0xff]
  %v48 = vld [vmem:[%s0 + $0x70] sm:$0xff]
  %v49 = vld [vmem:[%s0 + $0x78] sm:$0xff]
  %v50 = vld [vmem:[%s1] sm:$0xff]
  %v51 = vld [vmem:[%s1 + $0x8] sm:$0xff]
  %v52 = vld [vmem:[%s1 + $0x10] sm:$0xff]
  %v53 = vld [vmem:[%s1 + $0x18] sm:$0xff]
  %v54 = vld [vmem:[%s1 + $0x20] sm:$0xff]
  %v55 = vld [vmem:[%s1 + $0x28] sm:$0xff]
  %v56 = vld [vmem:[%s1 + $0x30] sm:$0xff]
  %v57 = vld [vmem:[%s1 + $0x38] sm:$0xff]
  %v58 = vld [vmem:[%s1 + $0x40] sm:$0xff]
  %v59 = vld [vmem:[%s1 + $0x48] sm:$0xff]
  %v60 = vld [vmem:[%s1 + $0x50] sm:$0xff]
  %v61 = vld [vmem:[%s1 + $0x58] sm:$0xff]
  %v62 = vld [vmem:[%s1 + $0x60] sm:$0xff]
  %v63 = vld [vmem:[%s1 + $0x68] sm:$0xff]
  %v64 = vld [vmem:[%s1 + $0x70] sm:$0xff]
  %v65 = vld [vmem:[%s1 + $0x78] sm:$0xff]
  %v66 = vld [vmem:[#allocation2] sm:$0xff]
  %v67 = vld [vmem:[#allocation2 + $0x8] sm:$0xff]
  %v68 = vld [vmem:[#allocation2 + $0x10] sm:$0xff]
  %v69 = vld [vmem:[#allocation2 + $0x18] sm:$0xff]
  %v70 = vld [vmem:[#allocation2 + $0x20] sm:$0xff]
  %v71 = vld [vmem:[#allocation2 + $0x28] sm:$0xff]
  %v72 = vld [vmem:[#allocation2 + $0x30] sm:$0xff]
  %v73 = vld [vmem:[#allocation2 + $0x38] sm:$0xff]
  %v74 = vld [vmem:[#allocation2 + $0x40] sm:$0xff]
  %v75 = vld [vmem:[#allocation2 + $0x48] sm:$0xff]
  %v76 = vld [vmem:[#allocation2 + $0x50] sm:$0xff]
  %v77 = vld [vmem:[#allocation2 + $0x58] sm:$0xff]
  %v78 = vld [vmem:[#allocation2 + $0x60] sm:$0xff]
  %v79 = vld [vmem:[#allocation2 + $0x68] sm:$0xff]
  %v80 = vld [vmem:[#allocation2 + $0x70] sm:$0xff]
  %v81 = vld [vmem:[#allocation2 + $0x78] sm:$0xff]
  %82 = vmatprep.subr.mxu0 0.0
  %83 = vmatpush1.msra.mxu0 %v50
  %84 = vmatprep.subr.mxu0 0.0
  %85 = vmatpush1.msra.mxu0 %v51
  %86 = vmatprep.subr.mxu0 0.0
  %87 = vmatpush1.msra.mxu0 %v52
  %88 = vmatprep.subr.mxu0 0.0
  %89 = vmatpush1.msra.mxu0 %v53
  %90 = vmatprep.subr.mxu0 0.0
  %91 = vmatpush1.msra.mxu0 %v54
  %92 = vmatprep.subr.mxu0 0.0
  %93 = vmatpush1.msra.mxu0 %v55
  %94 = vmatprep.subr.mxu0 0.0
  %95 = vmatpush1.msra.mxu0 %v56
  %96 = vmatprep.subr.mxu0 0.0
  %97 = vmatpush1.msra.mxu0 %v57
  %98 = vmatprep.subr.mxu0 0.0
  %99 = vmatpush1.msra.mxu0 %v58
  %100 = vmatprep.subr.mxu0 0.0
  %101 = vmatpush1.msra.mxu0 %v59
  %102 = vmatprep.subr.mxu0 0.0
  %103 = vmatpush1.msra.mxu0 %v60
  %104 = vmatprep.subr.mxu0 0.0
  %105 = vmatpush1.msra.mxu0 %v61
  %106 = vmatprep.subr.mxu0 0.0
  %107 = vmatpush1.msra.mxu0 %v62
  %108 = vmatprep.subr.mxu0 0.0
  %109 = vmatpush1.msra.mxu0 %v63
  %110 = vmatprep.subr.mxu0 0.0
  %111 = vmatpush1.msra.mxu0 %v64
  %112 = vmatprep.subr.mxu0 0.0
  %113 = vmatpush1.msra.mxu0 %v65
  %114 = vmatprep.subr.mxu0 0.0
  %115 = vmatpush1.msra.mxu0 0.0
  %116 = vmatprep.subr.mxu0 0.0
  %117 = vmatpush1.msra.mxu0 0.0
  %118 = vmatprep.subr.mxu0 0.0
  %119 = vmatpush1.msra.mxu0 0.0
  %120 = vmatprep.subr.mxu0 0.0
  %121 = vmatpush1.msra.mxu0 0.0
  %122 = vmatprep.subr.mxu0 0.0
  %123 = vmatpush1.msra.mxu0 0.0
  %124 = vmatprep.subr.mxu0 0.0
  %125 = vmatpush1.msra.mxu0 0.0
  %126 = vmatprep.subr.mxu0 0.0
  %127 = vmatpush1.msra.mxu0 0.0
  %128 = vmatprep.subr.mxu0 0.0
  %129 = vmatpush1.msra.mxu0 0.0
  %130 = vmatprep.subr.mxu0 0.0
  %131 = vmatpush1.msra.mxu0 0.0
  %132 = vmatprep.subr.mxu0 0.0
  %133 = vmatpush1.msra.mxu0 0.0
  %134 = vmatprep.subr.mxu0 0.0
  %135 = vmatpush1.msra.mxu0 0.0
  %136 = vmatprep.subr.mxu0 0.0
  %137 = vmatpush1.msra.mxu0 0.0
  %138 = vmatprep.subr.mxu0 0.0
  %139 = vmatpush1.msra.mxu0 0.0
  %140 = vmatprep.subr.mxu0 0.0
  %141 = vmatpush1.msra.mxu0 0.0
  %142 = vmatprep.subr.mxu0 0.0
  %143 = vmatpush1.msra.mxu0 0.0
  %144 = vmatprep.subr.mxu0 0.0
  %145 = vmatpush1.msra.mxu0 0.0
  %146 = vmatprep.mubr.f32.mxu0 0.0
  %147 = vmatmul.mubr.f32.gmra.mrb[0].mxu0 %v34
  %v148 = vpop.f32.mrb[0].mxu0
  %v149 = vadd.f32 0.0, %v148
  %v150 = vpop.f32.mrb[0].mxu0
  %151 = vmatprep.mubr.f32.mxu0 0.0
  %152 = vmatmul.mubr.f32.gmra.mrb[0].mxu0 %v35
  %v153 = vpop.f32.mrb[0].mxu0
  %v154 = vadd.f32 0.0, %v153
  %v155 = vpop.f32.mrb[0].mxu0
  %156 = vmatprep.mubr.f32.mxu0 0.0
  %157 = vmatmul.mubr.f32.gmra.mrb[0].mxu0 %v36
  %v158 = vpop.f32.mrb[0].mxu0
  %v159 = vadd.f32 0.0, %v158
  %v160 = vpop.f32.mrb[0].mxu0
  %161 = vmatprep.mubr.f32.mxu0 0.0
  %162 = vmatmul.mubr.f32.gmra.mrb[0].mxu0 %v37
  %v163 = vpop.f32.mrb[0].mxu0
  %v164 = vadd.f32 0.0, %v163
  %v165 = vpop.f32.mrb[0].mxu0
  %166 = vmatprep.mubr.f32.mxu0 0.0
  %167 = vmatmul.mubr.f32.gmra.mrb[0].mxu0 %v38
  %v168 = vpop.f32.mrb[0].mxu0
  %v169 = vadd.f32 0.0, %v168
  %v170 = vpop.f32.mrb[0].mxu0
  %171 = vmatprep.mubr.f32.mxu0 0.0
  %172 = vmatmul.mubr.f32.gmra.mrb[0].mxu0 %v39
  %v173 = vpop.f32.mrb[0].mxu0
  %v174 = vadd.f32 0.0, %v173
  %v175 = vpop.f32.mrb[0].mxu0
  %176 = vmatprep.mubr.f32.mxu0 0.0
  %177 = vmatmul.mubr.f32.gmra.mrb[0].mxu0 %v40
  %v178 = vpop.f32.mrb[0].mxu0
  %v179 = vadd.f32 0.0, %v178
  %v180 = vpop.f32.mrb[0].mxu0
  %181 = vmatprep.mubr.f32.mxu0 0.0
  %182 = vmatmul.mubr.f32.gmra.mrb[0].mxu0 %v41
  %v183 = vpop.f32.mrb[0].mxu0
  %v184 = vadd.f32 0.0, %v183
  %v185 = vpop.f32.mrb[0].mxu0
  %186 = vmatprep.mubr.f32.mxu0 0.0
  %187 = vmatmul.mubr.f32.gmra.mrb[0].mxu0 %v42
  %v188 = vpop.f32.mrb[0].mxu0
  %v189 = vadd.f32 0.0, %v188
  %v190 = vpop.f32.mrb[0].mxu0
  %191 = vmatprep.mubr.f32.mxu0 0.0
  %192 = vmatmul.mubr.f32.gmra.mrb[0].mxu0 %v43
  %v193 = vpop.f32.mrb[0].mxu0
  %v194 = vadd.f32 0.0, %v193
  %v195 = vpop.f32.mrb[0].mxu0
  %196 = vmatprep.mubr.f32.mxu0 0.0
  %197 = vmatmul.mubr.f32.gmra.mrb[0].mxu0 %v44
  %v198 = vpop.f32.mrb[0].mxu0
  %v199 = vadd.f32 0.0, %v198
  %v200 = vpop.f32.mrb[0].mxu0
  %201 = vmatprep.mubr.f32.mxu0 0.0
  %202 = vmatmul.mubr.f32.gmra.mrb[0].mxu0 %v45
  %v203 = vpop.f32.mrb[0].mxu0
  %v204 = vadd.f32 0.0, %v203
  %v205 = vpop.f32.mrb[0].mxu0
  %206 = vmatprep.mubr.f32.mxu0 0.0
  %207 = vmatmul.mubr.f32.gmra.mrb[0].mxu0 %v46
  %v208 = vpop.f32.mrb[0].mxu0
  %v209 = vadd.f32 0.0, %v208
  %v210 = vpop.f32.mrb[0].mxu0
  %211 = vmatprep.mubr.f32.mxu0 0.0
  %212 = vmatmul.mubr.f32.gmra.mrb[0].mxu0 %v47
  %v213 = vpop.f32.mrb[0].mxu0
  %v214 = vadd.f32 0.0, %v213
  %v215 = vpop.f32.mrb[0].mxu0
  %216 = vmatprep.mubr.f32.mxu0 0.0
  %217 = vmatmul.mubr.f32.gmra.mrb[0].mxu0 %v48
  %v218 = vpop.f32.mrb[0].mxu0
  %v219 = vadd.f32 0.0, %v218
  %v220 = vpop.f32.mrb[0].mxu0
  %221 = vmatprep.mubr.f32.mxu0 0.0
  %222 = vmatmul.mubr.f32.gmra.mrb[0].mxu0 %v49
  %v223 = vpop.f32.mrb[0].mxu0
  %v224 = vadd.f32 0.0, %v223
  %v225 = vpop.f32.mrb[0].mxu0
  %226 = vdwg.mxu0
  %v227 = vadd.f32 %v66, %v149
  %v228 = vadd.f32 %v67, %v154
  %v229 = vadd.f32 %v68, %v159
  %v230 = vadd.f32 %v69, %v164
  %v231 = vadd.f32 %v70, %v169
  %v232 = vadd.f32 %v71, %v174
  %v233 = vadd.f32 %v72, %v179
  %v234 = vadd.f32 %v73, %v184
  %v235 = vadd.f32 %v74, %v189
  %v236 = vadd.f32 %v75, %v194
  %v237 = vadd.f32 %v76, %v199
  %v238 = vadd.f32 %v77, %v204
  %v239 = vadd.f32 %v78, %v209
  %v240 = vadd.f32 %v79, %v214
  %v241 = vadd.f32 %v80, %v219
  %v242 = vadd.f32 %v81, %v224
  %243 = vst [vmem:[#allocation2] sm:$0xff] %v227
  %244 = vst [vmem:[#allocation2 + $0x8] sm:$0xff] %v228
  %245 = vst [vmem:[#allocation2 + $0x10] sm:$0xff] %v229
  %246 = vst [vmem:[#allocation2 + $0x18] sm:$0xff] %v230
  %247 = vst [vmem:[#allocation2 + $0x20] sm:$0xff] %v231
  %248 = vst [vmem:[#allocation2 + $0x28] sm:$0xff] %v232
  %249 = vst [vmem:[#allocation2 + $0x30] sm:$0xff] %v233
  %250 = vst [vmem:[#allocation2 + $0x38] sm:$0xff] %v234
  %251 = vst [vmem:[#allocation2 + $0x40] sm:$0xff] %v235
  %252 = vst [vmem:[#allocation2 + $0x48] sm:$0xff] %v236
  %253 = vst [vmem:[#allocation2 + $0x50] sm:$0xff] %v237
  %254 = vst [vmem:[#allocation2 + $0x58] sm:$0xff] %v238
  %255 = vst [vmem:[#allocation2 + $0x60] sm:$0xff] %v239
  %256 = vst [vmem:[#allocation2 + $0x68] sm:$0xff] %v240
  %257 = vst [vmem:[#allocation2 + $0x70] sm:$0xff] %v241
  %258 = vst [vmem:[#allocation2 + $0x78] sm:$0xff] %v242
  // Predicated region
  $region18: #{graph_convolution.2} parent=0 // pred_check
    %p259 = pneg %p14
  $region19: #{graph_convolution.2} parent=0 // pred_check_branch
    %261 = sbr.rel (%p259) target = $region21
  $region20: #{graph_convolution.2} parent=0 // pred_region
    %v262 = vld [vmem:[#allocation2] sm:$0xff]
    %v263 = vld [vmem:[#allocation2 + $0x8] sm:$0xff]
    %v264 = vld [vmem:[#allocation2 + $0x10] sm:$0xff]
    %v265 = vld [vmem:[#allocation2 + $0x18] sm:$0xff]
    %v266 = vld [vmem:[#allocation2 + $0x20] sm:$0xff]
    %v267 = vld [vmem:[#allocation2 + $0x28] sm:$0xff]
    %v268 = vld [vmem:[#allocation2 + $0x30] sm:$0xff]
    %v269 = vld [vmem:[#allocation2 + $0x38] sm:$0xff]
    %v270 = vld [vmem:[#allocation2 + $0x40] sm:$0xff]
    %v271 = vld [vmem:[#allocation2 + $0x48] sm:$0xff]
    %v272 = vld [vmem:[#allocation2 + $0x50] sm:$0xff]
    %v273 = vld [vmem:[#allocation2 + $0x58] sm:$0xff]
    %v274 = vld [vmem:[#allocation2 + $0x60] sm:$0xff]
    %v275 = vld [vmem:[#allocation2 + $0x68] sm:$0xff]
    %v276 = vld [vmem:[#allocation2 + $0x70] sm:$0xff]
    %v277 = vld [vmem:[#allocation2 + $0x78] sm:$0xff]
    %v278 = vld [vmem:[%s2] sm:$0xff]
    %v279 = vld [vmem:[%s2 + $0x8] sm:$0xff]
    %v280 = vld [vmem:[%s2 + $0x10] sm:$0xff]
    %v281 = vld [vmem:[%s2 + $0x18] sm:$0xff]
    %v282 = vld [vmem:[%s2 + $0x20] sm:$0xff]
    %v283 = vld [vmem:[%s2 + $0x28] sm:$0xff]
    %v284 = vld [vmem:[%s2 + $0x30] sm:$0xff]
    %v285 = vld [vmem:[%s2 + $0x38] sm:$0xff]
    %v286 = vld [vmem:[%s2 + $0x40] sm:$0xff]
    %v287 = vld [vmem:[%s2 + $0x48] sm:$0xff]
    %v288 = vld [vmem:[%s2 + $0x50] sm:$0xff]
    %v289 = vld [vmem:[%s2 + $0x58] sm:$0xff]
    %v290 = vld [vmem:[%s2 + $0x60] sm:$0xff]
    %v291 = vld [vmem:[%s2 + $0x68] sm:$0xff]
    %v292 = vld [vmem:[%s2 + $0x70] sm:$0xff]
    %v293 = vld [vmem:[%s2 + $0x78] sm:$0xff]
    %294 = vmatprep.subr.mxu0 0.0
    %295 = vmatpush1.msra.mxu0 %v278
    %296 = vmatprep.subr.mxu0 0.0
    %297 = vmatpush1.msra.mxu0 %v279
    %298 = vmatprep.subr.mxu0 0.0
    %299 = vmatpush1.msra.mxu0 %v280
    %300 = vmatprep.subr.mxu0 0.0
    %301 = vmatpush1.msra.mxu0 %v281
    %302 = vmatprep.subr.mxu0 0.0
    %303 = vmatpush1.msra.mxu0 %v282
    %304 = vmatprep.subr.mxu0 0.0
    %305 = vmatpush1.msra.mxu0 %v283
    %306 = vmatprep.subr.mxu0 0.0
    %307 = vmatpush1.msra.mxu0 %v284
    %308 = vmatprep.subr.mxu0 0.0
    %309 = vmatpush1.msra.mxu0 %v285
    %310 = vmatprep.subr.mxu0 0.0
    %311 = vmatpush1.msra.mxu0 %v286
    %312 = vmatprep.subr.mxu0 0.0
    %313 = vmatpush1.msra.mxu0 %v287
    %314 = vmatprep.subr.mxu0 0.0
    %315 = vmatpush1.msra.mxu0 %v288
    %316 = vmatprep.subr.mxu0 0.0
    %317 = vmatpush1.msra.mxu0 %v289
    %318 = vmatprep.subr.mxu0 0.0
    %319 = vmatpush1.msra.mxu0 %v290
    %320 = vmatprep.subr.mxu0 0.0
    %321 = vmatpush1.msra.mxu0 %v291
    %322 = vmatprep.subr.mxu0 0.0
    %323 = vmatpush1.msra.mxu0 %v292
    %324 = vmatprep.subr.mxu0 0.0
    %325 = vmatpush1.msra.mxu0 %v293
    %326 = vmatprep.subr.mxu0 0.0
    %327 = vmatpush1.msra.mxu0 0.0
    %328 = vmatprep.subr.mxu0 0.0
    %329 = vmatpush1.msra.mxu0 0.0
    %330 = vmatprep.subr.mxu0 0.0
    %331 = vmatpush1.msra.mxu0 0.0
    %332 = vmatprep.subr.mxu0 0.0
    %333 = vmatpush1.msra.mxu0 0.0
    %334 = vmatprep.subr.mxu0 0.0
    %335 = vmatpush1.msra.mxu0 0.0
    %336 = vmatprep.subr.mxu0 0.0
    %337 = vmatpush1.msra.mxu0 0.0
    %338 = vmatprep.subr.mxu0 0.0
    %339 = vmatpush1.msra.mxu0 0.0
    %340 = vmatprep.subr.mxu0 0.0
    %341 = vmatpush1.msra.mxu0 0.0
    %342 = vmatprep.subr.mxu0 0.0
    %343 = vmatpush1.msra.mxu0 0.0
    %344 = vmatprep.subr.mxu0 0.0
    %345 = vmatpush1.msra.mxu0 0.0
    %346 = vmatprep.subr.mxu0 0.0
    %347 = vmatpush1.msra.mxu0 0.0
    %348 = vmatprep.subr.mxu0 0.0
    %349 = vmatpush1.msra.mxu0 0.0
    %350 = vmatprep.subr.mxu0 0.0
    %351 = vmatpush1.msra.mxu0 0.0
    %352 = vmatprep.subr.mxu0 0.0
    %353 = vmatpush1.msra.mxu0 0.0
    %354 = vmatprep.subr.mxu0 0.0
    %355 = vmatpush1.msra.mxu0 0.0
    %356 = vmatprep.subr.mxu0 0.0
    %357 = vmatpush1.msra.mxu0 0.0
    %358 = vmatprep.mubr.f32.mxu0 0.0
    %359 = vmatmul.mubr.f32.gmra.mrb[0].mxu0 %v262
    %v360 = vpop.f32.mrb[0].mxu0
    %v361 = vadd.f32 0.0, %v360
    %v362 = vpop.f32.mrb[0].mxu0
    %363 = vmatprep.mubr.f32.mxu0 0.0
    %364 = vmatmul.mubr.f32.gmra.mrb[0].mxu0 %v263
    %v365 = vpop.f32.mrb[0].mxu0
    %v366 = vadd.f32 0.0, %v365
    %v367 = vpop.f32.mrb[0].mxu0
    %368 = vmatprep.mubr.f32.mxu0 0.0
    %369 = vmatmul.mubr.f32.gmra.mrb[0].mxu0 %v264
    %v370 = vpop.f32.mrb[0].mxu0
    %v371 = vadd.f32 0.0, %v370
    %v372 = vpop.f32.mrb[0].mxu0
    %373 = vmatprep.mubr.f32.mxu0 0.0
    %374 = vmatmul.mubr.f32.gmra.mrb[0].mxu0 %v265
    %v375 = vpop.f32.mrb[0].mxu0
    %v376 = vadd.f32 0.0, %v375
    %v377 = vpop.f32.mrb[0].mxu0
    %378 = vmatprep.mubr.f32.mxu0 0.0
    %379 = vmatmul.mubr.f32.gmra.mrb[0].mxu0 %v266
    %v380 = vpop.f32.mrb[0].mxu0
    %v381 = vadd.f32 0.0, %v380
    %v382 = vpop.f32.mrb[0].mxu0
    %383 = vmatprep.mubr.f32.mxu0 0.0
    %384 = vmatmul.mubr.f32.gmra.mrb[0].mxu0 %v267
    %v385 = vpop.f32.mrb[0].mxu0
    %v386 = vadd.f32 0.0, %v385
    %v387 = vpop.f32.mrb[0].mxu0
    %388 = vmatprep.mubr.f32.mxu0 0.0
    %389 = vmatmul.mubr.f32.gmra.mrb[0].mxu0 %v268
    %v390 = vpop.f32.mrb[0].mxu0
    %v391 = vadd.f32 0.0, %v390
    %v392 = vpop.f32.mrb[0].mxu0
    %393 = vmatprep.mubr.f32.mxu0 0.0
    %394 = vmatmul.mubr.f32.gmra.mrb[0].mxu0 %v269
    %v395 = vpop.f32.mrb[0].mxu0
    %v396 = vadd.f32 0.0, %v395
    %v397 = vpop.f32.mrb[0].mxu0
    %398 = vmatprep.mubr.f32.mxu0 0.0
    %399 = vmatmul.mubr.f32.gmra.mrb[0].mxu0 %v270
    %v400 = vpop.f32.mrb[0].mxu0
    %v401 = vadd.f32 0.0, %v400
    %v402 = vpop.f32.mrb[0].mxu0
    %403 = vmatprep.mubr.f32.mxu0 0.0
    %404 = vmatmul.mubr.f32.gmra.mrb[0].mxu0 %v271
    %v405 = vpop.f32.mrb[0].mxu0
    %v406 = vadd.f32 0.0, %v405
    %v407 = vpop.f32.mrb[0].mxu0
    %408 = vmatprep.mubr.f32.mxu0 0.0
    %409 = vmatmul.mubr.f32.gmra.mrb[0].mxu0 %v272
    %v410 = vpop.f32.mrb[0].mxu0
    %v411 = vadd.f32 0.0, %v410
    %v412 = vpop.f32.mrb[0].mxu0
    %413 = vmatprep.mubr.f32.mxu0 0.0
    %414 = vmatmul.mubr.f32.gmra.mrb[0].mxu0 %v273
    %v415 = vpop.f32.mrb[0].mxu0
    %v416 = vadd.f32 0.0, %v415
    %v417 = vpop.f32.mrb[0].mxu0
    %418 = vmatprep.mubr.f32.mxu0 0.0
    %419 = vmatmul.mubr.f32.gmra.mrb[0].mxu0 %v274
    %v420 = vpop.f32.mrb[0].mxu0
    %v421 = vadd.f32 0.0, %v420
    %v422 = vpop.f32.mrb[0].mxu0
    %423 = vmatprep.mubr.f32.mxu0 0.0
    %424 = vmatmul.mubr.f32.gmra.mrb[0].mxu0 %v275
    %v425 = vpop.f32.mrb[0].mxu0
    %v426 = vadd.f32 0.0, %v425
    %v427 = vpop.f32.mrb[0].mxu0
    %428 = vmatprep.mubr.f32.mxu0 0.0
    %429 = vmatmul.mubr.f32.gmra.mrb[0].mxu0 %v276
    %v430 = vpop.f32.mrb[0].mxu0
    %v431 = vadd.f32 0.0, %v430
    %v432 = vpop.f32.mrb[0].mxu0
    %433 = vmatprep.mubr.f32.mxu0 0.0
    %434 = vmatmul.mubr.f32.gmra.mrb[0].mxu0 %v277
    %v435 = vpop.f32.mrb[0].mxu0
    %v436 = vadd.f32 0.0, %v435
    %v437 = vpop.f32.mrb[0].mxu0
    %438 = vdwg.mxu0
    %439 = vst [vmem:[%s3] sm:$0xff] %v361
    %440 = vst [vmem:[%s3 + $0x8] sm:$0xff] %v366
    %441 = vst [vmem:[%s3 + $0x10] sm:$0xff] %v371
    %442 = vst [vmem:[%s3 + $0x18] sm:$0xff] %v376
    %443 = vst [vmem:[%s3 + $0x20] sm:$0xff] %v381
    %444 = vst [vmem:[%s3 + $0x28] sm:$0xff] %v386
    %445 = vst [vmem:[%s3 + $0x30] sm:$0xff] %v391
    %446 = vst [vmem:[%s3 + $0x38] sm:$0xff] %v396
    %447 = vst [vmem:[%s3 + $0x40] sm:$0xff] %v401
    %448 = vst [vmem:[%s3 + $0x48] sm:$0xff] %v406
    %449 = vst [vmem:[%s3 + $0x50] sm:$0xff] %v411
    %450 = vst [vmem:[%s3 + $0x58] sm:$0xff] %v416
    %451 = vst [vmem:[%s3 + $0x60] sm:$0xff] %v421
    %452 = vst [vmem:[%s3 + $0x68] sm:$0xff] %v426
    %453 = vst [vmem:[%s3 + $0x70] sm:$0xff] %v431
    %454 = vst [vmem:[%s3 + $0x78] sm:$0xff] %v436
  $region21: #{graph_convolution.2} parent=0 // pred_fallthru
    _
  // Predicated region
  $region22: #{graph_convolution.2} parent=0 // pred_check
    _
  $region23: #{graph_convolution.2} parent=0 // pred_check_branch
    %456 = sbr.rel (0) target = $region25
  $region24: #{graph_convolution.2} parent=0 // pred_region
    _
  $region25: #{graph_convolution.2} parent=0 // pred_fallthru
    _
  // Predicated region
  $region26: #{graph_convolution.2} parent=0 // pred_check
    _
  $region27: #{graph_convolution.2} parent=0 // pred_check_branch
    %458 = sbr.rel (0) target = $region29
  $region28: #{graph_convolution.2} parent=0 // pred_region
    _
  $region29: #{graph_convolution.2} parent=0 // pred_fallthru
    _

</llo_original>
